<compile_context>
chip_gen: v7x
topology: tpu7x:2x2x1
jax: 0.10.0
libtpu: 0.0.40
codegen_flags: <defaults>
</compile_context>

<pallas_src>
import functools

import jax
import jax.numpy as jnp
from jax.experimental import pallas as pl
from jax.experimental.pallas import tpu as pltpu

# ---- Hyperparameters (small, but consistent with the module: 64*(H/32)*(W/32)=512) ----
NUM_MFCC = 32           # spectrogram height H
SEQ_LEN = 256           # spectrogram width W == LSTM sequence length T
LSTM_HIDDEN_SIZE = 32
LSTM_NUM_LAYERS = 2
NUM_CLASSES = 10
BATCH = 2
BN_EPS = 1e-5


# ====================== Conv3x3 + BN + ReLU + MaxPool (one layer) ======================
# Layout: (B, H, C, W) -- W in lanes (lane-dense), C in sublanes.
def _conv_bn_relu_pool_kernel(x_ref, w_ref, s_ref, t_ref, sel_ref, o_ref,
                              *, H, W, Cin, Cout, pool):
    # x_ref  : (1, H+2, Cin, W+2)   zero-padded input, one batch element per grid step
    # w_ref  : (Cout, 9*Cin)        conv weights, k = (dy*3 + dx)*Cin + ci
    # s_ref  : (Cout, 1)            folded BN scale = gamma / sqrt(var + eps)
    # t_ref  : (Cout, 1)            folded BN shift = (conv_bias - mean)*scale + beta
    # sel_ref: (W, pool*Wo)         0/1 selection matrix for the W max-pool subsample
    # o_ref  : (1, Ho, Cout, Wo)
    Ho, Wo = H // pool, W // pool
    # Hoisted loop-invariant broadcasts (JAX does not CSE broadcast_in_dim).
    scale_b = jnp.broadcast_to(s_ref[...], (Cout, W))
    shift_b = jnp.broadcast_to(t_ref[...], (Cout, W))

    def band(ph, carry):                                    # one pooled output row
        h0 = ph * pool
        wmat = w_ref[...]                                   # (Cout, 9*Cin)
        band_max = None
        for i in range(pool):                               # static: pool in {2, 4}
            h = h0 + i                                      # conv output row
            cols = []
            for dy in range(3):
                row = x_ref[0, h + dy, :, :]                # (Cin, W+2)
                for dx in range(3):
                    cols.append(row[:, dx:dx + W])          # (Cin, W)
            patch = jnp.concatenate(cols, axis=0)           # (9*Cin, W) im2col
            conv = jnp.dot(wmat, patch,                     # ONE MXU matmul per row
                           preferred_element_type=jnp.float32)
            y = jnp.maximum(conv * scale_b + shift_b, 0.0)  # BN + ReLU
            band_max = y if band_max is None else jnp.maximum(band_max, y)
        # W max-pool: gather the `pool` phases with one selection matmul, then max.
        sub = jnp.dot(band_max, sel_ref[...],
                      preferred_element_type=jnp.float32)   # (Cout, pool*Wo)
        pooled = sub[:, 0:Wo]
        for j in range(1, pool):
            pooled = jnp.maximum(pooled, sub[:, j * Wo:(j + 1) * Wo])
        o_ref[0, ph, :, :] = pooled                         # (Cout, Wo) block store
        return carry

    jax.lax.fori_loop(0, Ho, band, 0)


def _pool_select(W, pool):
    """sel[w, j*Wo + wo] = 1 iff w == wo*pool + j  (used to subsample along W)."""
    Wo = W // pool
    w_idx = jnp.arange(W)[:, None]
    k = jnp.arange(pool * Wo)[None, :]
    return (w_idx == (k % Wo) * pool + (k // Wo)).astype(jnp.float32)


def conv_bn_relu_pool(x_bhcw, layer):
    B, H, Cin, W = x_bhcw.shape
    wmat, scale, shift, pool = layer["wmat"], layer["scale"], layer["shift"], layer["pool"]
    Cout = wmat.shape[0]
    Ho, Wo = H // pool, W // pool
    xp = jnp.pad(x_bhcw, ((0, 0), (1, 1), (0, 0), (1, 1)))
    sel = _pool_select(W, pool)
    kernel = functools.partial(_conv_bn_relu_pool_kernel,
                               H=H, W=W, Cin=Cin, Cout=Cout, pool=pool)
    return pl.pallas_call(
        kernel,
        out_shape=jax.ShapeDtypeStruct((B, Ho, Cout, Wo), jnp.float32),
        grid=(B,),
        in_specs=[
            pl.BlockSpec((1, H + 2, Cin, W + 2), lambda b: (b, 0, 0, 0)),
            pl.BlockSpec((Cout, 9 * Cin), lambda b: (0, 0)),
            pl.BlockSpec((Cout, 1), lambda b: (0, 0)),
            pl.BlockSpec((Cout, 1), lambda b: (0, 0)),
            pl.BlockSpec((W, pool * Wo), lambda b: (0, 0)),
        ],
        out_specs=pl.BlockSpec((1, Ho, Cout, Wo), lambda b: (b, 0, 0, 0)),
        compiler_params=pltpu.CompilerParams(
            dimension_semantics=("parallel",)),  # v7x: one batch element per TensorCore
    )(xp, wmat, scale, shift, sel)


# ================ Fused 2-layer LSTM (+ input projection + FC head) kernel ================
def _lstm2_fc_kernel(seq_ref, cnn_ref, wih1_ref, whh1_ref, b1_ref,
                     w2_ref, b2_ref, fcw_c_ref, fcw_l_ref, fcb_ref,
                     o_ref, xp_sc, *, T, B, H):
    # seq_ref : (T*B, D)   time-major LSTM inputs, row index = t*B + b
    # cnn_ref : (B, 512)   flattened CNN embedding
    # wih1    : (D, 4H)    layer-1 W_ih^T ; whh1: (H, 4H) layer-1 W_hh^T
    # b1, b2  : (1, 4H)    fused b_ih + b_hh per layer
    # w2      : (2H, 4H)   [W_ih2^T ; W_hh2^T]  (layer-2 input is [h1, h2])
    # fcw_c   : (512, C), fcw_l: (H, C), fcb: (1, C)
    # o_ref   : (B, C)     logits
    # xp_sc   : (T*B, 4H)  VMEM scratch: layer-1 input projection for all timesteps
    # Prologue: layer-1 input projection for every timestep as ONE matmul.
    xp_sc[...] = jnp.dot(seq_ref[...], wih1_ref[...],
                         preferred_element_type=jnp.float32) + b1_ref[...]
    whh1 = whh1_ref[...]
    w2 = w2_ref[...]
    b2 = b2_ref[...]

    def cell(gates, c):                       # PyTorch gate order: i, f, g, o
        i = jax.nn.sigmoid(gates[:, 0:H])
        f = jax.nn.sigmoid(gates[:, H:2 * H])
        g = jnp.tanh(gates[:, 2 * H:3 * H])
        o = jax.nn.sigmoid(gates[:, 3 * H:4 * H])
        c_new = f * c + i * g
        return o * jnp.tanh(c_new), c_new

    def one_step(t, carry):
        h1, c1, h2, c2 = carry
        xp = xp_sc[pl.ds(t * B, B), :]                               # (B, 4H)
        g1 = xp + jnp.dot(h1, whh1, preferred_element_type=jnp.float32)
        h1, c1 = cell(g1, c1)
        # layer-2 (wavefront): runs on h1 of the same timestep; dropout = identity.
        g2 = jnp.dot(jnp.concatenate([h1, h2], axis=1), w2,
                     preferred_element_type=jnp.float32) + b2
        h2, c2 = cell(g2, c2)
        return (h1, c1, h2, c2)

    def step2(i, carry):                       # manual 2x unroll for cross-step ILP
        carry = one_step(2 * i, carry)
        carry = one_step(2 * i + 1, carry)
        return carry

    z = jnp.zeros((B, H), jnp.float32)
    carry = jax.lax.fori_loop(0, T // 2, step2, (z, z, z, z))
    if T % 2:                                  # static; T = 256 so this is skipped
        carry = one_step(T - 1, carry)
    h2 = carry[2]
    # Fused FC head: logits = [cnn_emb, h2_final] @ fc_w^T + fc_b
    o_ref[...] = (jnp.dot(cnn_ref[...], fcw_c_ref[...],
                          preferred_element_type=jnp.float32)
                  + jnp.dot(h2, fcw_l_ref[...],
                            preferred_element_type=jnp.float32)
                  + fcb_ref[...])


def lstm_fc_head(seq2d, cnn_emb, p):
    TB, D = seq2d.shape
    B, Cemb = cnn_emb.shape
    T = TB // B
    H = p["whh1"].shape[0]
    NC = p["fcb"].shape[1]
    kernel = functools.partial(_lstm2_fc_kernel, T=T, B=B, H=H)
    return pl.pallas_call(
        kernel,
        out_shape=jax.ShapeDtypeStruct((B, NC), jnp.float32),
        grid=(1,),
        in_specs=[
            pl.BlockSpec((TB, D), lambda i: (0, 0)),
            pl.BlockSpec((B, Cemb), lambda i: (0, 0)),
            pl.BlockSpec((D, 4 * H), lambda i: (0, 0)),
            pl.BlockSpec((H, 4 * H), lambda i: (0, 0)),
            pl.BlockSpec((1, 4 * H), lambda i: (0, 0)),
            pl.BlockSpec((2 * H, 4 * H), lambda i: (0, 0)),
            pl.BlockSpec((1, 4 * H), lambda i: (0, 0)),
            pl.BlockSpec((Cemb, NC), lambda i: (0, 0)),
            pl.BlockSpec((H, NC), lambda i: (0, 0)),
            pl.BlockSpec((1, NC), lambda i: (0, 0)),
        ],
        out_specs=pl.BlockSpec((B, NC), lambda i: (0, 0)),
        scratch_shapes=[pltpu.VMEM((TB, 4 * H), jnp.float32)],
        compiler_params=pltpu.CompilerParams(dimension_semantics=("arbitrary",)),
    )(seq2d, cnn_emb, p["wih1"], p["whh1"], p["b1"], p["w2"], p["b2"],
      p["fcw_cnn"], p["fcw_lstm"], p["fcb"])


# ================================== Full forward (Pallas) ==================================
def audio_net_forward(x_nchw, params):
    B = x_nchw.shape[0]
    # --- CNN block in (B, H, C, W) layout; dropout = identity at inference ---
    y = jnp.transpose(x_nchw, (0, 2, 1, 3))                 # (B, H, 1, W)
    for layer in params["cnn"]:
        y = conv_bn_relu_pool(y, layer)                     # -> (B, Ho, Cout, Wo)
    # flatten in NCHW order to match torch.flatten(start_dim=1)
    cnn_emb = jnp.transpose(y, (0, 2, 1, 3)).reshape(B, -1)  # (B, 512)

    # --- LSTM path: x.squeeze(1).permute(0,2,1) -> (B, T, D); run time-major (T*B, D) ---
    seq2d = jnp.transpose(x_nchw[:, 0], (2, 0, 1)).reshape(-1, x_nchw.shape[2])
    return lstm_fc_head(seq2d, cnn_emb, params["lstm_fc"])  # (B, num_classes)


# ==================================== Parameter packing ====================================
def pack_params(raw):
    cnn = []
    for (w_oihw, b, gamma, beta, mean, var, pool) in raw["cnn"]:
        cout, cin = w_oihw.shape[0], w_oihw.shape[1]
        scale = gamma / jnp.sqrt(var + BN_EPS)
        shift = (b - mean) * scale + beta
        # im2col weight: k = (dy*3 + dx)*Cin + ci
        wmat = jnp.transpose(w_oihw, (0, 2, 3, 1)).reshape(cout, 9 * cin)
        cnn.append({"wmat": wmat, "scale": scale.reshape(cout, 1),
                    "shift": shift.reshape(cout, 1), "pool": pool})

    l1, l2 = raw["lstm"]
    split = raw["fc_w"].shape[1] - LSTM_HIDDEN_SIZE
    lstm_fc = {
        "wih1": l1["w_ih"].T,
        "whh1": l1["w_hh"].T,
        "b1": (l1["b_ih"] + l1["b_hh"]).reshape(1, -1),
        "w2": jnp.concatenate([l2["w_ih"].T, l2["w_hh"].T], axis=0),
        "b2": (l2["b_ih"] + l2["b_hh"]).reshape(1, -1),
        "fcw_cnn": raw["fc_w"][:, :split].T,
        "fcw_lstm": raw["fc_w"][:, split:].T,
        "fcb": raw["fc_b"].reshape(1, -1),
    }
    return {"cnn": cnn, "lstm_fc": lstm_fc}


# ================================== Pure-JAX reference ==================================
def reference_forward(x_nchw, raw):
    B = x_nchw.shape[0]
    y = jnp.transpose(x_nchw, (0, 2, 3, 1))                 # NHWC
    for (w_oihw, b, gamma, beta, mean, var, pool) in raw["cnn"]:
        w_hwio = jnp.transpose(w_oihw, (2, 3, 1, 0))
        y = jax.lax.conv_general_dilated(
            y, w_hwio, window_strides=(1, 1), padding="SAME",
            dimension_numbers=("NHWC", "HWIO", "NHWC")) + b
        y = (y - mean) / jnp.sqrt(var + BN_EPS) * gamma + beta
        y = jnp.maximum(y, 0.0)
        Bq, Hq, Wq, Cq = y.shape
        y = y.reshape(Bq, Hq // pool, pool, Wq // pool, pool, Cq).max(axis=(2, 4))
    cnn_emb = jnp.transpose(y, (0, 3, 1, 2)).reshape(B, -1)

    seq = jnp.transpose(x_nchw[:, 0], (0, 2, 1))            # (B, T, D)
    Hh = LSTM_HIDDEN_SIZE
    h_seq = seq
    for lp in raw["lstm"]:
        wih, whh, bih, bhh = lp["w_ih"], lp["w_hh"], lp["b_ih"], lp["b_hh"]

        def step(carry, xt, wih=wih, whh=whh, bih=bih, bhh=bhh):
            h, c = carry
            gates = jnp.dot(xt, wih.T) + bih + jnp.dot(h, whh.T) + bhh
            i = jax.nn.sigmoid(gates[:, 0:Hh])
            f = jax.nn.sigmoid(gates[:, Hh:2 * Hh])
            g = jnp.tanh(gates[:, 2 * Hh:3 * Hh])
            o = jax.nn.sigmoid(gates[:, 3 * Hh:4 * Hh])
            c = f * c + i * g
            h = o * jnp.tanh(c)
            return (h, c), h

        init = (jnp.zeros((B, Hh), jnp.float32), jnp.zeros((B, Hh), jnp.float32))
        _, hs = jax.lax.scan(step, init, jnp.swapaxes(h_seq, 0, 1))
        h_seq = jnp.swapaxes(hs, 0, 1)
    lstm_emb = h_seq[:, -1, :]
    emb = jnp.concatenate([cnn_emb, lstm_emb], axis=1)
    return jnp.dot(emb, raw["fc_w"].T) + raw["fc_b"]


# ================================ Deterministic parameters ================================
def init_params(key):
    keys = iter(jax.random.split(key, 32))

    def nrm(shape, s):
        return s * jax.random.normal(next(keys), shape, jnp.float32)

    cnn = []
    for (cin, cout, pool), ws in zip([(1, 16, 2), (16, 32, 4), (32, 64, 4)],
                                     [0.3, 0.1, 0.08]):
        w_oihw = nrm((cout, cin, 3, 3), ws)                 # PyTorch layout
        b = nrm((cout,), 0.1)
        gamma = 1.0 + nrm((cout,), 0.1)
        beta = nrm((cout,), 0.1)
        mean = nrm((cout,), 0.1)
        var = 1.0 + 0.5 * jax.random.uniform(next(keys), (cout,), jnp.float32)
        cnn.append((w_oihw, b, gamma, beta, mean, var, pool))

    lstm = []
    din = NUM_MFCC
    for _ in range(LSTM_NUM_LAYERS):
        lstm.append({
            "w_ih": nrm((4 * LSTM_HIDDEN_SIZE, din), 0.2),  # (4H, Din), gate order i,f,g,o
            "w_hh": nrm((4 * LSTM_HIDDEN_SIZE, LSTM_HIDDEN_SIZE), 0.2),
            "b_ih": nrm((4 * LSTM_HIDDEN_SIZE,), 0.1),
            "b_hh": nrm((4 * LSTM_HIDDEN_SIZE,), 0.1),
        })
        din = LSTM_HIDDEN_SIZE

    fc_w = nrm((NUM_CLASSES, 512 + LSTM_HIDDEN_SIZE), 0.1)  # PyTorch (out, in)
    fc_b = nrm((NUM_CLASSES,), 0.1)
    return {"cnn": cnn, "lstm": lstm, "fc_w": fc_w, "fc_b": fc_b}


if __name__ == "__main__":
    pkey, xkey = jax.random.split(jax.random.PRNGKey(0))
    raw = init_params(pkey)
    params = pack_params(raw)

    x = jax.random.normal(xkey, (BATCH, 1, NUM_MFCC, SEQ_LEN), jnp.float32)

    logits = jax.block_until_ready(audio_net_forward(x, params))
    assert logits.shape == (BATCH, NUM_CLASSES)

    ref = jax.block_until_ready(reference_forward(x, raw))
    max_err = float(jnp.max(jnp.abs(logits - ref)))
    ref_scale = max(1.0, float(jnp.max(jnp.abs(ref))))
    # Kernels use default (single-pass bf16) MXU precision per perf review, so compare
    # with a scale-aware tolerance; structural bugs produce O(logit-scale) errors.
    if not max_err <= 5e-2 * ref_scale:
        raise AssertionError(
            f"Pallas output mismatch vs reference (max abs err={max_err}, scale={ref_scale})")
    print("KERNEL_OK")
</pallas_src>

<mosaic_0001>
module attributes {stable_mosaic.version = 11 : i64} {
  func.func @_conv_bn_relu_pool_kernel(%arg0: i32, %arg1: memref<1x34x1x258xf32, #tpu.memory_space<vmem>>, %arg2: memref<16x9xf32, #tpu.memory_space<vmem>>, %arg3: memref<16x1xf32, #tpu.memory_space<vmem>>, %arg4: memref<16x1xf32, #tpu.memory_space<vmem>>, %arg5: memref<256x256xf32, #tpu.memory_space<vmem>>, %arg6: memref<1x16x16x128xf32, #tpu.memory_space<vmem>>) attributes {dimension_semantics = [#tpu.dimension_semantics<parallel>], iteration_bounds = array<i64: 2>, scalar_prefetch = 0 : i64, scratch_operands = 0 : i64, tpu.core_type = #tpu.core_type<tc>, window_params = [{transform_indices = @transform_0, window_bounds = array<i64: 1, 34, 1, 258>}, {pipeline_mode = #tpu.pipeline_mode<synchronous>, transform_indices = @transform_1, window_bounds = array<i64: 16, 9>}, {pipeline_mode = #tpu.pipeline_mode<synchronous>, transform_indices = @transform_2, window_bounds = array<i64: 16, 1>}, {pipeline_mode = #tpu.pipeline_mode<synchronous>, transform_indices = @transform_3, window_bounds = array<i64: 16, 1>}, {pipeline_mode = #tpu.pipeline_mode<synchronous>, transform_indices = @transform_4, window_bounds = array<i64: 256, 256>}, {transform_indices = @transform_5, window_bounds = array<i64: 1, 16, 16, 128>}]} {
    %c0 = arith.constant 0 : index
    %c0_0 = arith.constant 0 : index
    %0 = vector.load %arg3[%c0, %c0_0] : memref<16x1xf32, #tpu.memory_space<vmem>>, vector<16x1xf32>
    %1 = vector.shape_cast %0 : vector<16x1xf32> to vector<16x1xf32>
    %2 = vector.broadcast %1 : vector<16x1xf32> to vector<16x256xf32>
    %c0_1 = arith.constant 0 : index
    %c0_2 = arith.constant 0 : index
    %3 = vector.load %arg4[%c0_1, %c0_2] : memref<16x1xf32, #tpu.memory_space<vmem>>, vector<16x1xf32>
    %4 = vector.shape_cast %3 : vector<16x1xf32> to vector<16x1xf32>
    %5 = vector.broadcast %4 : vector<16x1xf32> to vector<16x256xf32>
    %c0_i32 = arith.constant 0 : i32
    %c16_i32 = arith.constant 16 : i32
    %6 = arith.addi %c0_i32, %c16_i32 : i32
    %c1_i32 = arith.constant 1 : i32
    scf.for %arg7 = %c0_i32 to %6 step %c1_i32  : i32 {
      %c2_i32 = arith.constant 2 : i32
      %7 = arith.muli %arg7, %c2_i32 : i32
      %c0_4 = arith.constant 0 : index
      %c0_5 = arith.constant 0 : index
      %8 = vector.load %arg2[%c0_4, %c0_5] : memref<16x9xf32, #tpu.memory_space<vmem>>, vector<16x9xf32>
      %c0_i32_6 = arith.constant 0 : i32
      %9 = arith.addi %7, %c0_i32_6 : i32
      %c0_i32_7 = arith.constant 0 : i32
      %10 = arith.addi %9, %c0_i32_7 : i32
      %c0_8 = arith.constant 0 : index
      %11 = arith.index_cast %10 : i32 to index
      %c0_9 = arith.constant 0 : index
      %c0_10 = arith.constant 0 : index
      %12 = vector.load %arg1[%c0_8, %11, %c0_9, %c0_10] : memref<1x34x1x258xf32, #tpu.memory_space<vmem>>, vector<1x1x1x258xf32>
      %13 = vector.shape_cast %12 : vector<1x1x1x258xf32> to vector<1x258xf32>
      %14 = vector.extract_strided_slice %13 {offsets = [0, 0], sizes = [1, 256], strides = [1, 1]} : vector<1x258xf32> to vector<1x256xf32>
      %15 = vector.extract_strided_slice %13 {offsets = [0, 1], sizes = [1, 256], strides = [1, 1]} : vector<1x258xf32> to vector<1x256xf32>
      %16 = vector.extract_strided_slice %13 {offsets = [0, 2], sizes = [1, 256], strides = [1, 1]} : vector<1x258xf32> to vector<1x256xf32>
      %c1_i32_11 = arith.constant 1 : i32
      %17 = arith.addi %9, %c1_i32_11 : i32
      %c0_12 = arith.constant 0 : index
      %18 = arith.index_cast %17 : i32 to index
      %c0_13 = arith.constant 0 : index
      %c0_14 = arith.constant 0 : index
      %19 = vector.load %arg1[%c0_12, %18, %c0_13, %c0_14] : memref<1x34x1x258xf32, #tpu.memory_space<vmem>>, vector<1x1x1x258xf32>
      %20 = vector.shape_cast %19 : vector<1x1x1x258xf32> to vector<1x258xf32>
      %21 = vector.extract_strided_slice %20 {offsets = [0, 0], sizes = [1, 256], strides = [1, 1]} : vector<1x258xf32> to vector<1x256xf32>
      %22 = vector.extract_strided_slice %20 {offsets = [0, 1], sizes = [1, 256], strides = [1, 1]} : vector<1x258xf32> to vector<1x256xf32>
      %23 = vector.extract_strided_slice %20 {offsets = [0, 2], sizes = [1, 256], strides = [1, 1]} : vector<1x258xf32> to vector<1x256xf32>
      %c2_i32_15 = arith.constant 2 : i32
      %24 = arith.addi %9, %c2_i32_15 : i32
      %c0_16 = arith.constant 0 : index
      %25 = arith.index_cast %24 : i32 to index
      %c0_17 = arith.constant 0 : index
      %c0_18 = arith.constant 0 : index
      %26 = vector.load %arg1[%c0_16, %25, %c0_17, %c0_18] : memref<1x34x1x258xf32, #tpu.memory_space<vmem>>, vector<1x1x1x258xf32>
      %27 = vector.shape_cast %26 : vector<1x1x1x258xf32> to vector<1x258xf32>
      %28 = vector.extract_strided_slice %27 {offsets = [0, 0], sizes = [1, 256], strides = [1, 1]} : vector<1x258xf32> to vector<1x256xf32>
      %29 = vector.extract_strided_slice %27 {offsets = [0, 1], sizes = [1, 256], strides = [1, 1]} : vector<1x258xf32> to vector<1x256xf32>
      %30 = vector.extract_strided_slice %27 {offsets = [0, 2], sizes = [1, 256], strides = [1, 1]} : vector<1x258xf32> to vector<1x256xf32>
      %31 = tpu.concatenate %14, %15, %16, %21, %22, %23, %28, %29, %30 in 0 : vector<1x256xf32>, vector<1x256xf32>, vector<1x256xf32>, vector<1x256xf32>, vector<1x256xf32>, vector<1x256xf32>, vector<1x256xf32>, vector<1x256xf32>, vector<1x256xf32> -> vector<9x256xf32>
      %cst = arith.constant dense<0.000000e+00> : vector<16x256xf32>
      %32 = tpu.matmul %8, %31, %cst {dimension_numbers = #tpu.dot_dimension_numbers<[1], [0], [0], [1], [0, 0, 1, 1], [], []>} : vector<16x9xf32>, vector<9x256xf32>, vector<16x256xf32> -> vector<16x256xf32>
      %33 = arith.mulf %32, %2 : vector<16x256xf32>
      %34 = arith.addf %33, %5 : vector<16x256xf32>
      %cst_19 = arith.constant 0.000000e+00 : f32
      %35 = vector.broadcast %cst_19 : f32 to vector<16x256xf32>
      %36 = arith.maximumf %34, %35 : vector<16x256xf32>
      %c1_i32_20 = arith.constant 1 : i32
      %37 = arith.addi %7, %c1_i32_20 : i32
      %c0_i32_21 = arith.constant 0 : i32
      %38 = arith.addi %37, %c0_i32_21 : i32
      %c0_22 = arith.constant 0 : index
      %39 = arith.index_cast %38 : i32 to index
      %c0_23 = arith.constant 0 : index
      %c0_24 = arith.constant 0 : index
      %40 = vector.load %arg1[%c0_22, %39, %c0_23, %c0_24] : memref<1x34x1x258xf32, #tpu.memory_space<vmem>>, vector<1x1x1x258xf32>
      %41 = vector.shape_cast %40 : vector<1x1x1x258xf32> to vector<1x258xf32>
      %42 = vector.extract_strided_slice %41 {offsets = [0, 0], sizes = [1, 256], strides = [1, 1]} : vector<1x258xf32> to vector<1x256xf32>
      %43 = vector.extract_strided_slice %41 {offsets = [0, 1], sizes = [1, 256], strides = [1, 1]} : vector<1x258xf32> to vector<1x256xf32>
      %44 = vector.extract_strided_slice %41 {offsets = [0, 2], sizes = [1, 256], strides = [1, 1]} : vector<1x258xf32> to vector<1x256xf32>
      %c1_i32_25 = arith.constant 1 : i32
      %45 = arith.addi %37, %c1_i32_25 : i32
      %c0_26 = arith.constant 0 : index
      %46 = arith.index_cast %45 : i32 to index
      %c0_27 = arith.constant 0 : index
      %c0_28 = arith.constant 0 : index
      %47 = vector.load %arg1[%c0_26, %46, %c0_27, %c0_28] : memref<1x34x1x258xf32, #tpu.memory_space<vmem>>, vector<1x1x1x258xf32>
      %48 = vector.shape_cast %47 : vector<1x1x1x258xf32> to vector<1x258xf32>
      %49 = vector.extract_strided_slice %48 {offsets = [0, 0], sizes = [1, 256], strides = [1, 1]} : vector<1x258xf32> to vector<1x256xf32>
      %50 = vector.extract_strided_slice %48 {offsets = [0, 1], sizes = [1, 256], strides = [1, 1]} : vector<1x258xf32> to vector<1x256xf32>
      %51 = vector.extract_strided_slice %48 {offsets = [0, 2], sizes = [1, 256], strides = [1, 1]} : vector<1x258xf32> to vector<1x256xf32>
      %c2_i32_29 = arith.constant 2 : i32
      %52 = arith.addi %37, %c2_i32_29 : i32
      %c0_30 = arith.constant 0 : index
      %53 = arith.index_cast %52 : i32 to index
      %c0_31 = arith.constant 0 : index
      %c0_32 = arith.constant 0 : index
      %54 = vector.load %arg1[%c0_30, %53, %c0_31, %c0_32] : memref<1x34x1x258xf32, #tpu.memory_space<vmem>>, vector<1x1x1x258xf32>
      %55 = vector.shape_cast %54 : vector<1x1x1x258xf32> to vector<1x258xf32>
      %56 = vector.extract_strided_slice %55 {offsets = [0, 0], sizes = [1, 256], strides = [1, 1]} : vector<1x258xf32> to vector<1x256xf32>
      %57 = vector.extract_strided_slice %55 {offsets = [0, 1], sizes = [1, 256], strides = [1, 1]} : vector<1x258xf32> to vector<1x256xf32>
      %58 = vector.extract_strided_slice %55 {offsets = [0, 2], sizes = [1, 256], strides = [1, 1]} : vector<1x258xf32> to vector<1x256xf32>
      %59 = tpu.concatenate %42, %43, %44, %49, %50, %51, %56, %57, %58 in 0 : vector<1x256xf32>, vector<1x256xf32>, vector<1x256xf32>, vector<1x256xf32>, vector<1x256xf32>, vector<1x256xf32>, vector<1x256xf32>, vector<1x256xf32>, vector<1x256xf32> -> vector<9x256xf32>
      %cst_33 = arith.constant dense<0.000000e+00> : vector<16x256xf32>
      %60 = tpu.matmul %8, %59, %cst_33 {dimension_numbers = #tpu.dot_dimension_numbers<[1], [0], [0], [1], [0, 0, 1, 1], [], []>} : vector<16x9xf32>, vector<9x256xf32>, vector<16x256xf32> -> vector<16x256xf32>
      %61 = arith.mulf %60, %2 : vector<16x256xf32>
      %62 = arith.addf %61, %5 : vector<16x256xf32>
      %cst_34 = arith.constant 0.000000e+00 : f32
      %63 = vector.broadcast %cst_34 : f32 to vector<16x256xf32>
      %64 = arith.maximumf %62, %63 : vector<16x256xf32>
      %65 = arith.maximumf %36, %64 : vector<16x256xf32>
      %c0_35 = arith.constant 0 : index
      %c0_36 = arith.constant 0 : index
      %66 = vector.load %arg5[%c0_35, %c0_36] : memref<256x256xf32, #tpu.memory_space<vmem>>, vector<256x256xf32>
      %cst_37 = arith.constant dense<0.000000e+00> : vector<16x256xf32>
      %67 = tpu.matmul %65, %66, %cst_37 {dimension_numbers = #tpu.dot_dimension_numbers<[1], [0], [0], [1], [0, 0, 1, 1], [], []>} : vector<16x256xf32>, vector<256x256xf32>, vector<16x256xf32> -> vector<16x256xf32>
      %68 = vector.extract_strided_slice %67 {offsets = [0, 0], sizes = [16, 128], strides = [1, 1]} : vector<16x256xf32> to vector<16x128xf32>
      %69 = vector.extract_strided_slice %67 {offsets = [0, 128], sizes = [16, 128], strides = [1, 1]} : vector<16x256xf32> to vector<16x128xf32>
      %70 = arith.maximumf %68, %69 : vector<16x128xf32>
      %c0_38 = arith.constant 0 : index
      %71 = arith.index_cast %arg7 : i32 to index
      %c0_39 = arith.constant 0 : index
      %c0_40 = arith.constant 0 : index
      %72 = vector.load %arg6[%c0_38, %71, %c0_39, %c0_40] : memref<1x16x16x128xf32, #tpu.memory_space<vmem>>, vector<1x1x16x128xf32>
      %73 = vector.shape_cast %72 : vector<1x1x16x128xf32> to vector<16x128xf32>
      %74 = vector.shape_cast %70 : vector<16x128xf32> to vector<1x1x16x128xf32>
      tpu.vector_store %arg6[%c0_38, %71, %c0_39, %c0_40], %74 {strides = array<i32>} : memref<1x16x16x128xf32, #tpu.memory_space<vmem>>, vector<1x1x16x128xf32>,
    }
    %c16_i32_3 = arith.constant 16 : i32
    return
  }
  func.func @transform_0(%arg0: i32) -> (i32, i32, i32, i32) {
    %c0_i32 = arith.constant 0 : i32
    %c0_i32_0 = arith.constant 0 : i32
    %c0_i32_1 = arith.constant 0 : i32
    %c0_i32_2 = arith.constant 0 : i32
    return %arg0, %c0_i32, %c0_i32_0, %c0_i32_1 : i32, i32, i32, i32
  }
  func.func @transform_1(%arg0: i32) -> (i32, i32) {
    %c0_i32 = arith.constant 0 : i32
    %c0_i32_0 = arith.constant 0 : i32
    %c0_i32_1 = arith.constant 0 : i32
    return %c0_i32, %c0_i32_0 : i32, i32
  }
  func.func @transform_2(%arg0: i32) -> (i32, i32) {
    %c0_i32 = arith.constant 0 : i32
    %c0_i32_0 = arith.constant 0 : i32
    %c0_i32_1 = arith.constant 0 : i32
    return %c0_i32, %c0_i32_0 : i32, i32
  }
  func.func @transform_3(%arg0: i32) -> (i32, i32) {
    %c0_i32 = arith.constant 0 : i32
    %c0_i32_0 = arith.constant 0 : i32
    %c0_i32_1 = arith.constant 0 : i32
    return %c0_i32, %c0_i32_0 : i32, i32
  }
  func.func @transform_4(%arg0: i32) -> (i32, i32) {
    %c0_i32 = arith.constant 0 : i32
    %c0_i32_0 = arith.constant 0 : i32
    %c0_i32_1 = arith.constant 0 : i32
    return %c0_i32, %c0_i32_0 : i32, i32
  }
  func.func @transform_5(%arg0: i32) -> (i32, i32, i32, i32) {
    %c0_i32 = arith.constant 0 : i32
    %c0_i32_0 = arith.constant 0 : i32
    %c0_i32_1 = arith.constant 0 : i32
    %c0_i32_2 = arith.constant 0 : i32
    return %arg0, %c0_i32, %c0_i32_0, %c0_i32_1 : i32, i32, i32, i32
  }
}

</mosaic_0001>

<llo_original>
// kernel: tpu_custom_call.1
$region0: #{tpu_custom_call.1}
  #allocation0 [shape = 'u32[]', space=smem, size = 0x4, offset = 0x4, fixed_abs, tag = 'smem constant byte address 0x4 - core index']
  #allocation1 [shape = 'u32[144,128]{1,0:T(1,128)}', space=vmem, size = 0x12000, scoped, tag = 'internal scratch']
  %s0 = inlined_call_operand.hbm [shape: f32[2,34,1,258], index: 0, kind: input, shape index: {}]
  %s1 = inlined_call_operand.vmem [shape: f32[16,9], index: 1, kind: input, shape index: {}]
  %s2 = inlined_call_operand.vmem [shape: f32[16,1], index: 2, kind: input, shape index: {}]
  %s3 = inlined_call_operand.vmem [shape: f32[16,1], index: 3, kind: input, shape index: {}]
  %s4 = inlined_call_operand.hbm [shape: f32[256,256], index: 4, kind: input, shape index: {}]
  %s5 = inlined_call_operand.hbm [shape: f32[2,16,16,128], index: 5, kind: output, shape index: {}]
  %s6 = sld [smem:[#allocation0]]
  $region68: #{tpu_custom_call.1} parent=0
    _
  %s8 = ssub.s32 1, %s6
  %s9 = scalar_select 0, %s8, %s6
  $region1: #{tpu_custom_call.1} parent=0
    #allocation2 [shape = 'u8[104448]{0}', space=vmem, size = 0x19800, scoped, tag = 'input window, operand 0']
    #allocation3 [shape = 's32[2]{0}', space=sflag, size = 0x8, scoped, tag = 'scoped memory for tpu_custom_call.1']
    #allocation4 [shape = 's32[2]{0}', space=sflag, size = 0x8, scoped, tag = 'scoped memory for tpu_custom_call.1']
    #allocation5 [shape = 'u8[262144]{0}', space=vmem, size = 0x40000, scoped, tag = 'input window, operand 4, single buffered']
    #allocation6 [shape = 's32[1]{0}', space=sflag, size = 0x4, scoped, tag = 'scoped memory for tpu_custom_call.1']
    #allocation7 [shape = 'u8[262144]{0}', space=vmem, size = 0x40000, scoped, tag = 'output window, operand 0']
    %10 = vsyncpa [#allocation3], 0
    %s11 = scalar_lea.sflag [#allocation3], 1
    %12 = vsyncpa %s11, 0
    %13 = vsyncpa [#allocation6], 0
    %14 = vsyncpa [#allocation4], 0
    %s15 = scalar_lea.sflag [#allocation4], 1
    %16 = vsyncpa %s15, 0
    loop: start=0, step=1, limit=4
    $region2: #{tpu_custom_call.1} parent=1 // loop_pre_header
      _
    $region3: #{tpu_custom_call.1} parent=1 // loop_header
      %s18 = sphi 0, %s22
      %p19 = scmp.ge.s32.totalorder %s18, 4
      %s28 = sphi 0, %s30
      %s31 = sphi 0, %s28
      %s32 = sphi 0, %s31
      %s48 = sphi 0, %s32
      %s52 = sphi 0, %s52
      %s54 = sphi 0, %s52
      %s55 = sphi 0, %s54
      %s69 = sphi 0, %s55
      %s73 = sphi 0, %s73
      %s75 = sphi 0, %s73
      %s76 = sphi 0, %s75
      %s90 = sphi 0, %s76
      %s94 = sphi 0, %s94
      %s96 = sphi 0, %s94
      %s97 = sphi 0, %s96
      %s111 = sphi 0, %s97
      %s115 = sphi 0, %s115
      %s117 = sphi 0, %s115
      %s118 = sphi 0, %s117
      %s132 = sphi 0, %s118
      %s138 = sphi 0, %s140
      %s141 = sphi 0, %s138
      %s142 = sphi 0, %s141
      %s158 = sphi 0, %s142
    $region4: #{tpu_custom_call.1} parent=1 // loop_header_branch
      %21 = sbr.rel (%p19) target = $region8
    $region5: #{tpu_custom_call.1} parent=1 // loop_body
      %s23 = ssub.s32 %s18, 1
      %s24 = ssub.s32 %s18, 2
      %s25 = sadd.s32 %s18, 1
      %s26 = ssub.s32 %s18, %s25
      %p27 = scmp.eq.s32.totalorder %s26, 0
      %s29 = sadd.s32 %s28, 1
      %s30 = scalar_select %p27, %s28, %s29
      %p33 = pneg %p27
      %p34 = scmp.eq.s32.totalorder %s18, 1
      %p35 = por %p33, %p34
      %p36 = scmp.ne.s32.totalorder %s28, %s31
      %p37 = scmp.eq.s32.totalorder %s18, 0
      %p38 = por %p36, %p37
      %p39 = scmp.ne.s32.totalorder %s28, %s31
      %p40 = scmp.eq.s32.totalorder %s23, 1
      %p41 = por %p39, %p40
      %p42 = scmp.ne.s32.totalorder %s31, %s32
      %p43 = scmp.eq.s32.totalorder %s23, 0
      %p44 = por %p42, %p43
      %p45 = scmp.ne.s32.totalorder %s31, %s32
      %p46 = scmp.eq.s32.totalorder %s24, 1
      %p47 = por %p45, %p46
      %p49 = scmp.ne.s32.totalorder %s32, %s48
      %p50 = scmp.eq.s32.totalorder %s24, 0
      %p51 = por %p49, %p50
      %s53 = sadd.s32 %s52, 1
      %p56 = scmp.eq.s32.totalorder %s18, 1
      %p57 = scmp.ne.s32.totalorder %s52, %s54
      %p58 = scmp.eq.s32.totalorder %s18, 0
      %p59 = por %p57, %p58
      %p60 = scmp.ne.s32.totalorder %s52, %s54
      %p61 = scmp.eq.s32.totalorder %s23, 1
      %p62 = por %p60, %p61
      %p63 = scmp.ne.s32.totalorder %s54, %s55
      %p64 = scmp.eq.s32.totalorder %s23, 0
      %p65 = por %p63, %p64
      %p66 = scmp.ne.s32.totalorder %s54, %s55
      %p67 = scmp.eq.s32.totalorder %s24, 1
      %p68 = por %p66, %p67
      %p70 = scmp.ne.s32.totalorder %s55, %s69
      %p71 = scmp.eq.s32.totalorder %s24, 0
      %p72 = por %p70, %p71
      %s74 = sadd.s32 %s73, 1
      %p77 = scmp.eq.s32.totalorder %s18, 1
      %p78 = scmp.ne.s32.totalorder %s73, %s75
      %p79 = scmp.eq.s32.totalorder %s18, 0
      %p80 = por %p78, %p79
      %p81 = scmp.ne.s32.totalorder %s73, %s75
      %p82 = scmp.eq.s32.totalorder %s23, 1
      %p83 = por %p81, %p82
      %p84 = scmp.ne.s32.totalorder %s75, %s76
      %p85 = scmp.eq.s32.totalorder %s23, 0
      %p86 = por %p84, %p85
      %p87 = scmp.ne.s32.totalorder %s75, %s76
      %p88 = scmp.eq.s32.totalorder %s24, 1
      %p89 = por %p87, %p88
      %p91 = scmp.ne.s32.totalorder %s76, %s90
      %p92 = scmp.eq.s32.totalorder %s24, 0
      %p93 = por %p91, %p92
      %s95 = sadd.s32 %s94, 1
      %p98 = scmp.eq.s32.totalorder %s18, 1
      %p99 = scmp.ne.s32.totalorder %s94, %s96
      %p100 = scmp.eq.s32.totalorder %s18, 0
      %p101 = por %p99, %p100
      %p102 = scmp.ne.s32.totalorder %s94, %s96
      %p103 = scmp.eq.s32.totalorder %s23, 1
      %p104 = por %p102, %p103
      %p105 = scmp.ne.s32.totalorder %s96, %s97
      %p106 = scmp.eq.s32.totalorder %s23, 0
      %p107 = por %p105, %p106
      %p108 = scmp.ne.s32.totalorder %s96, %s97
      %p109 = scmp.eq.s32.totalorder %s24, 1
      %p110 = por %p108, %p109
      %p112 = scmp.ne.s32.totalorder %s97, %s111
      %p113 = scmp.eq.s32.totalorder %s24, 0
      %p114 = por %p112, %p113
      %s116 = sadd.s32 %s115, 1
      %p119 = scmp.eq.s32.totalorder %s18, 1
      %p120 = scmp.ne.s32.totalorder %s115, %s117
      %p121 = scmp.eq.s32.totalorder %s18, 0
      %p122 = por %p120, %p121
      %p123 = scmp.ne.s32.totalorder %s115, %s117
      %p124 = scmp.eq.s32.totalorder %s23, 1
      %p125 = por %p123, %p124
      %p126 = scmp.ne.s32.totalorder %s117, %s118
      %p127 = scmp.eq.s32.totalorder %s23, 0
      %p128 = por %p126, %p127
      %p129 = scmp.ne.s32.totalorder %s117, %s118
      %p130 = scmp.eq.s32.totalorder %s24, 1
      %p131 = por %p129, %p130
      %p133 = scmp.ne.s32.totalorder %s118, %s132
      %p134 = scmp.eq.s32.totalorder %s24, 0
      %p135 = por %p133, %p134
      %s136 = ssub.s32 %s18, %s25
      %p137 = scmp.eq.s32.totalorder %s136, 0
      %s139 = sadd.s32 %s138, 1
      %s140 = scalar_select %p137, %s138, %s139
      %p143 = pneg %p137
      %p144 = scmp.eq.s32.totalorder %s18, 1
      %p145 = por %p143, %p144
      %p146 = scmp.ne.s32.totalorder %s138, %s141
      %p147 = scmp.eq.s32.totalorder %s18, 0
      %p148 = por %p146, %p147
      %p149 = scmp.ne.s32.totalorder %s138, %s141
      %p150 = scmp.eq.s32.totalorder %s23, 1
      %p151 = por %p149, %p150
      %p152 = scmp.ne.s32.totalorder %s141, %s142
      %p153 = scmp.eq.s32.totalorder %s23, 0
      %p154 = por %p152, %p153
      %p155 = scmp.ne.s32.totalorder %s141, %s142
      %p156 = scmp.eq.s32.totalorder %s24, 1
      %p157 = por %p155, %p156
      %p159 = scmp.ne.s32.totalorder %s142, %s158
      %p160 = scmp.eq.s32.totalorder %s24, 0
      %p161 = por %p159, %p160
      %p162 = scmp.le.s32.totalorder 1, %s18
      %p163 = scmp.lt.s32.totalorder %s18, 3
      %p164 = pnand %p162, %p163
      %p165 = pneg %p164
      // Predicated region
      $region9: #{tpu_custom_call.1} parent=5 // pred_check
        _
      $region10: #{tpu_custom_call.1} parent=5 // pred_check_branch
        %167 = sbr.rel (%p164) target = $region12
      $region11: #{tpu_custom_call.1} parent=5 // pred_region
        %s168 = ssub.s32 %s18, 1
        // Predicated region
        $region13: #{tpu_custom_call.1} parent=11 // pred_check
          %p169 = pneg %p65
        $region14: #{tpu_custom_call.1} parent=11 // pred_check_branch
          %171 = sbr.rel (%p169) target = $region16
        $region15: #{tpu_custom_call.1} parent=11 // pred_region
          _
        $region16: #{tpu_custom_call.1} parent=11 // pred_fallthru
          _
        // Predicated region
        $region17: #{tpu_custom_call.1} parent=11 // pred_check
          %p172 = pneg %p86
        $region18: #{tpu_custom_call.1} parent=11 // pred_check_branch
          %174 = sbr.rel (%p172) target = $region20
        $region19: #{tpu_custom_call.1} parent=11 // pred_region
          _
        $region20: #{tpu_custom_call.1} parent=11 // pred_fallthru
          _
        // Predicated region
        $region21: #{tpu_custom_call.1} parent=11 // pred_check
          %p175 = pneg %p107
        $region22: #{tpu_custom_call.1} parent=11 // pred_check_branch
          %177 = sbr.rel (%p175) target = $region24
        $region23: #{tpu_custom_call.1} parent=11 // pred_region
          _
        $region24: #{tpu_custom_call.1} parent=11 // pred_fallthru
          _
        // Predicated region
        $region25: #{tpu_custom_call.1} parent=11 // pred_check
          %p178 = pneg %p128
        $region26: #{tpu_custom_call.1} parent=11 // pred_check_branch
          %180 = sbr.rel (%p178) target = $region28
        $region27: #{tpu_custom_call.1} parent=11 // pred_region
          %s182 = ssub.s32 8192, 8192
          %183 = vsyncadd [#allocation6], %s182
          %s184 = sshll.u32 [#allocation5], 4
          %s185 = int_to_ptr.vmem [resolvable:$true] %s184
          %190 = dma.hbm_to_vmem [thread:$0]  %s4, 8192, %s185, [#allocation6], 256, 256, 16
        $region28: #{tpu_custom_call.1} parent=11 // pred_fallthru
          _
      $region12: #{tpu_custom_call.1} parent=5 // pred_fallthru
        _
      %p191 = scmp.lt.s32.totalorder %s18, 2
      // Predicated region
      $region29: #{tpu_custom_call.1} parent=5 // pred_check
        %p192 = pneg %p191
      $region30: #{tpu_custom_call.1} parent=5 // pred_check_branch
        %194 = sbr.rel (%p192) target = $region32
      $region31: #{tpu_custom_call.1} parent=5 // pred_region
        // Predicated region
        $region33: #{tpu_custom_call.1} parent=31 // pred_check
          %p195 = pneg %p38
        $region34: #{tpu_custom_call.1} parent=31 // pred_check_branch
          %197 = sbr.rel (%p195) target = $region36
        $region35: #{tpu_custom_call.1} parent=31 // pred_region
          %s198 = sand.u32 %s28, 1
          %s199 = scalar_lea.sflag [#allocation3], %s198
          %s200 = sand.u32 %s28, 1
          %s201 = smul.addr %s200, 102
          %s202 = scalar_lea.vmem [#allocation2], %s201
          %s204 = ssub.s32 1632, 1632
          %205 = vsyncadd %s199, %s204
          %s206 = smul.addr %s18, 102
          %s207 = smul.addr %s206, 16
          %s208 = scalar_lea.hbm %s0, %s207
          %s209 = sshll.u32 %s202, 4
          %s210 = int_to_ptr.vmem [resolvable:$true] %s209
          %215 = dma.hbm_to_vmem [thread:$0]  %s208, 1632, %s210, %s199, 48, 48, 3
        $region36: #{tpu_custom_call.1} parent=31 // pred_fallthru
          _
      $region32: #{tpu_custom_call.1} parent=5 // pred_fallthru
        _
      %p216 = scmp.le.s32.totalorder 1, %s18
      %p217 = scmp.lt.s32.totalorder %s18, 3
      %p218 = pnand %p216, %p217
      %p219 = pneg %p218
      // Predicated region
      $region37: #{tpu_custom_call.1} parent=5 // pred_check
        _
      $region38: #{tpu_custom_call.1} parent=5 // pred_check_branch
        %221 = sbr.rel (%p218) target = $region40
      $region39: #{tpu_custom_call.1} parent=5 // pred_region
        %s222 = ssub.s32 %s18, 1
        %s223 = sand.u32 %s31, 1
        %s224 = scalar_lea.sflag [#allocation3], %s223
        %s225 = sand.u32 %s31, 1
        %s226 = smul.addr %s225, 102
        %s227 = scalar_lea.vmem [#allocation2], %s226
        // Predicated region
        $region41: #{tpu_custom_call.1} parent=39 // pred_check
          %p228 = pneg %p44
        $region42: #{tpu_custom_call.1} parent=39 // pred_check_branch
          %230 = sbr.rel (%p228) target = $region44
        $region43: #{tpu_custom_call.1} parent=39 // pred_region
          %231 = dma.done %s224, 1632
        $region44: #{tpu_custom_call.1} parent=39 // pred_fallthru
          _
        // Predicated region
        $region45: #{tpu_custom_call.1} parent=39 // pred_check
          %p232 = pneg %p128
        $region46: #{tpu_custom_call.1} parent=39 // pred_check_branch
          %234 = sbr.rel (%p232) target = $region48
        $region47: #{tpu_custom_call.1} parent=39 // pred_region
          %235 = dma.done [#allocation6], 8192
        $region48: #{tpu_custom_call.1} parent=39 // pred_fallthru
          _
        %s236 = sand.u32 %s31, 1
        %s237 = scalar_lea.sflag [#allocation3], %s236
        %s238 = sand.u32 %s31, 1
        %s239 = smul.addr %s238, 102
        %s240 = scalar_lea.vmem [#allocation2], %s239
        %p241 = pneg %p44
        %p242 = pneg %p41
        %p243 = pneg %p65
        %p244 = pneg %p62
        %p245 = pneg %p86
        %p246 = pneg %p83
        %p247 = pneg %p107
        %p248 = pneg %p104
        %p249 = pneg %p128
        %p250 = pneg %p125
        %p251 = pneg %p154
        %p252 = pneg %p151
        %s253 = sand.u32 %s141, 1
        %s254 = scalar_lea.sflag [#allocation4], %s253
        %s255 = sand.u32 %s141, 1
        %s256 = smul.addr %s255, 256
        %s257 = scalar_lea.vmem [#allocation7], %s256
        %v258 = vld [vmem:[%s2] sm:$0xff]
        %v259 = vld [vmem:[%s2 + $0x8] sm:$0xff]
        %261 = vset.pattern.permute.xlu0 0
        %262 = vperm.xlu0 %261, %v258
        %v263 = vpop.permute.xlu0 %262
        %266 = vset.pattern.permute.xlu0 0
        %267 = vperm.xlu0 %266, %v259
        %v268 = vpop.permute.xlu0 %267
        %v270 = vld [vmem:[%s3] sm:$0xff]
        %v271 = vld [vmem:[%s3 + $0x8] sm:$0xff]
        %273 = vset.pattern.permute.xlu0 0
        %274 = vperm.xlu0 %273, %v270
        %v275 = vpop.permute.xlu0 %274
        %278 = vset.pattern.permute.xlu0 0
        %279 = vperm.xlu0 %278, %v271
        %v280 = vpop.permute.xlu0 %279
        loop: start=0, step=1, limit=16
        $region49: #{tpu_custom_call.1} parent=39 // loop_pre_header
          _
        $region50: #{tpu_custom_call.1} parent=39 // loop_header
          %s283 = sphi 0, %s287
          %p284 = scmp.ge.s32.totalorder %s283, 16
        $region51: #{tpu_custom_call.1} parent=39 // loop_header_branch
          %286 = sbr.rel (%p284) target = $region55
        $region52: #{tpu_custom_call.1} parent=39 // loop_body
          %s288 = smul.u32 %s283, 2
          %v289 = vld [vmem:[%s1] sm:$0xff]
          %v290 = vld [vmem:[%s1 + $0x8] sm:$0xff]
          %s291 = smul.u32 %s288, 3
          %s292 = scalar_lea.vmem %s227, %s291 [#allocation2]
          %v293 = vld [vmem:[%s292] sm:$0x7]
          %s294 = sadd.s32 %s288, 1
          %s295 = smul.u32 %s294, 3
          %s296 = scalar_lea.vmem %s227, %s295 [#allocation2]
          %v297 = vld [vmem:[%s296] sm:$0x7]
          %s298 = sadd.s32 %s288, 2
          %s299 = smul.u32 %s298, 3
          %s300 = scalar_lea.vmem %s227, %s299 [#allocation2]
          %v301 = vld [vmem:[%s300] sm:$0x7]
          %v303 = vlaneseq
          %v304 = vshrl.u32 %v303, 7
          %v305 = vsub.s32 0, %v304
          %v306 = vrot.slane %v293, %v305
          %v307 = vlaneseq
          %v308 = vshrl.u32 %v307, 7
          %v309 = vsub.s32 1, %v308
          %v310 = vrot.slane %v293, %v309
          %v313 = vlaneseq
          %v314 = vshrl.u32 %v313, 7
          %v315 = vsub.s32 2, %v314
          %v316 = vrot.slane %v293, %v315
          %317 = vrot.lane.b32.xlu0 %v306, 127
          %v318 = vpop.permute.xlu0 %317
          %319 = vrot.lane.b32.xlu0 %v310, 127
          %v320 = vpop.permute.xlu0 %319
          %321 = vrot.lane.b32.xlu0 %v316, 127
          %v322 = vpop.permute.xlu0 %321
          %vm323 = vcmask 1039360
          %v324 = vsel %vm323, %v318, %v320
          %v325 = vsel %vm323, %v320, %v322
          %328 = vrot.lane.b32.xlu0 %v306, 126
          %v329 = vpop.permute.xlu0 %328
          %330 = vrot.lane.b32.xlu0 %v310, 126
          %v331 = vpop.permute.xlu0 %330
          %332 = vrot.lane.b32.xlu0 %v316, 126
          %v333 = vpop.permute.xlu0 %332
          %vm334 = vcmask 1031168
          %v335 = vsel %vm334, %v329, %v331
          %v336 = vsel %vm334, %v331, %v333
          %v340 = vlaneseq
          %v341 = vshrl.u32 %v340, 7
          %v342 = vsub.s32 0, %v341
          %v343 = vrot.slane %v297, %v342
          %v344 = vlaneseq
          %v345 = vshrl.u32 %v344, 7
          %v346 = vsub.s32 1, %v345
          %v347 = vrot.slane %v297, %v346
          %v350 = vlaneseq
          %v351 = vshrl.u32 %v350, 7
          %v352 = vsub.s32 2, %v351
          %v353 = vrot.slane %v297, %v352
          %354 = vrot.lane.b32.xlu0 %v343, 127
          %v355 = vpop.permute.xlu0 %354
          %356 = vrot.lane.b32.xlu0 %v347, 127
          %v357 = vpop.permute.xlu0 %356
          %358 = vrot.lane.b32.xlu0 %v353, 127
          %v359 = vpop.permute.xlu0 %358
          %v360 = vsel %vm323, %v355, %v357
          %v361 = vsel %vm323, %v357, %v359
          %364 = vrot.lane.b32.xlu0 %v343, 126
          %v365 = vpop.permute.xlu0 %364
          %366 = vrot.lane.b32.xlu0 %v347, 126
          %v367 = vpop.permute.xlu0 %366
          %368 = vrot.lane.b32.xlu0 %v353, 126
          %v369 = vpop.permute.xlu0 %368
          %v370 = vsel %vm334, %v365, %v367
          %v371 = vsel %vm334, %v367, %v369
          %v375 = vlaneseq
          %v376 = vshrl.u32 %v375, 7
          %v377 = vsub.s32 0, %v376
          %v378 = vrot.slane %v301, %v377
          %v379 = vlaneseq
          %v380 = vshrl.u32 %v379, 7
          %v381 = vsub.s32 1, %v380
          %v382 = vrot.slane %v301, %v381
          %v385 = vlaneseq
          %v386 = vshrl.u32 %v385, 7
          %v387 = vsub.s32 2, %v386
          %v388 = vrot.slane %v301, %v387
          %389 = vrot.lane.b32.xlu0 %v378, 127
          %v390 = vpop.permute.xlu0 %389
          %391 = vrot.lane.b32.xlu0 %v382, 127
          %v392 = vpop.permute.xlu0 %391
          %393 = vrot.lane.b32.xlu0 %v388, 127
          %v394 = vpop.permute.xlu0 %393
          %v395 = vsel %vm323, %v390, %v392
          %v396 = vsel %vm323, %v392, %v394
          %399 = vrot.lane.b32.xlu0 %v378, 126
          %v400 = vpop.permute.xlu0 %399
          %401 = vrot.lane.b32.xlu0 %v382, 126
          %v402 = vpop.permute.xlu0 %401
          %403 = vrot.lane.b32.xlu0 %v388, 126
          %v404 = vpop.permute.xlu0 %403
          %v405 = vsel %vm334, %v400, %v402
          %v406 = vsel %vm334, %v402, %v404
          %vm407 = vcmask 1040384
          %v408 = vsel %vm407, %v306, %v324
          %v409 = vsel %vm407, %v310, %v325
          %vm410 = vcmask 1041408
          %v411 = vsel %vm410, %v408, %v335
          %v412 = vsel %vm410, %v409, %v336
          %vm413 = vcmask 1042432
          %v414 = vsel %vm413, %v411, %v343
          %v415 = vsel %vm413, %v412, %v347
          %vm416 = vcmask 1043456
          %v417 = vsel %vm416, %v414, %v360
          %v418 = vsel %vm416, %v415, %v361
          %vm419 = vcmask 1044480
          %v420 = vsel %vm419, %v417, %v370
          %v421 = vsel %vm419, %v418, %v371
          %vm422 = vcmask 1045504
          %v423 = vsel %vm422, %v420, %v378
          %v424 = vsel %vm422, %v421, %v382
          %vm425 = vcmask 1046528
          %v426 = vsel %vm425, %v423, %v395
          %v427 = vsel %vm425, %v424, %v396
          %vm428 = vcmask 72704
          %v430 = vsel %vm428, %v289, 0
          %v433 = vsel %vm428, %v290, 0
          %v435 = vsel %vm407, %v405, 0
          %v437 = vsel %vm407, %v406, 0
          %439 = vmatprep.subr.mxu0 %v427
          %440 = vmatpush1.msra.mxu0 %v426
          %441 = vmatprep.subr.mxu0 %v437
          %442 = vmatpush1.msra.mxu0 %v435
          %443 = vmatprep.subr.mxu0 0.0
          %444 = vmatpush1.msra.mxu0 0.0
          %445 = vmatprep.subr.mxu0 0.0
          %446 = vmatpush1.msra.mxu0 0.0
          %447 = vmatprep.subr.mxu0 0.0
          %448 = vmatpush1.msra.mxu0 0.0
          %449 = vmatprep.subr.mxu0 0.0
          %450 = vmatpush1.msra.mxu0 0.0
          %451 = vmatprep.subr.mxu0 0.0
          %452 = vmatpush1.msra.mxu0 0.0
          %453 = vmatprep.subr.mxu0 0.0
          %454 = vmatpush1.msra.mxu0 0.0
          %455 = vmatprep.subr.mxu0 0.0
          %456 = vmatpush1.msra.mxu0 0.0
          %457 = vmatprep.subr.mxu0 0.0
          %458 = vmatpush1.msra.mxu0 0.0
          %459 = vmatprep.subr.mxu0 0.0
          %460 = vmatpush1.msra.mxu0 0.0
          %461 = vmatprep.subr.mxu0 0.0
          %462 = vmatpush1.msra.mxu0 0.0
          %463 = vmatprep.subr.mxu0 0.0
          %464 = vmatpush1.msra.mxu0 0.0
          %465 = vmatprep.subr.mxu0 0.0
          %466 = vmatpush1.msra.mxu0 0.0
          %467 = vmatprep.subr.mxu0 0.0
          %468 = vmatpush1.msra.mxu0 0.0
          %469 = vmatprep.subr.mxu0 0.0
          %470 = vmatpush1.msra.mxu0 0.0
          %471 = vmatprep.subr.mxu0 0.0
          %472 = vmatpush1.msra.mxu0 0.0
          %473 = vmatprep.subr.mxu0 0.0
          %474 = vmatpush1.msra.mxu0 0.0
          %475 = vmatprep.subr.mxu0 0.0
          %476 = vmatpush1.msra.mxu0 0.0
          %477 = vmatprep.subr.mxu0 0.0
          %478 = vmatpush1.msra.mxu0 0.0
          %479 = vmatprep.subr.mxu0 0.0
          %480 = vmatpush1.msra.mxu0 0.0
          %481 = vmatprep.subr.mxu0 0.0
          %482 = vmatpush1.msra.mxu0 0.0
          %483 = vmatprep.subr.mxu0 0.0
          %484 = vmatpush1.msra.mxu0 0.0
          %485 = vmatprep.subr.mxu0 0.0
          %486 = vmatpush1.msra.mxu0 0.0
          %487 = vmatprep.subr.mxu0 0.0
          %488 = vmatpush1.msra.mxu0 0.0
          %489 = vmatprep.subr.mxu0 0.0
          %490 = vmatpush1.msra.mxu0 0.0
          %491 = vmatprep.subr.mxu0 0.0
          %492 = vmatpush1.msra.mxu0 0.0
          %493 = vmatprep.subr.mxu0 0.0
          %494 = vmatpush1.msra.mxu0 0.0
          %495 = vmatprep.subr.mxu0 0.0
          %496 = vmatpush1.msra.mxu0 0.0
          %497 = vmatprep.subr.mxu0 0.0
          %498 = vmatpush1.msra.mxu0 0.0
          %499 = vmatprep.subr.mxu0 0.0
          %500 = vmatpush1.msra.mxu0 0.0
          %501 = vmatprep.subr.mxu0 0.0
          %502 = vmatpush1.msra.mxu0 0.0
          %503 = vmatprep.mubr.f32.mxu0 0.0
          %504 = vmatmul.mubr.f32.gmra.mrb[0].mxu0 %v430
          %v505 = vpop.f32.mrb[0].mxu0
          %v506 = vadd.f32 0.0, %v505
          %v507 = vpop.f32.mrb[0].mxu0
          %v508 = vadd.f32 0.0, %v507
          %509 = vmatprep.mubr.f32.mxu0 0.0
          %510 = vmatmul.mubr.f32.gmra.mrb[0].mxu0 %v433
          %v511 = vpop.f32.mrb[0].mxu0
          %v512 = vadd.f32 0.0, %v511
          %v513 = vpop.f32.mrb[0].mxu0
          %v514 = vadd.f32 0.0, %v513
          %515 = vdwg.mxu0
          %v516 = vmul.f32 %v506, %v263
          %v517 = vmul.f32 %v508, %v263
          %v518 = vmul.f32 %v512, %v268
          %v519 = vmul.f32 %v514, %v268
          %v520 = vadd.f32 %v516, %v275
          %v521 = vadd.f32 %v517, %v275
          %v522 = vadd.f32 %v518, %v280
          %v523 = vadd.f32 %v519, %v280
          %v524 = vmax.f32 %v520, 0.0
          %v525 = vmax.f32 %v521, 0.0
          %v526 = vmax.f32 %v522, 0.0
          %v527 = vmax.f32 %v523, 0.0
          %s528 = sadd.s32 %s288, 3
          %s529 = smul.u32 %s528, 3
          %s530 = scalar_lea.vmem %s227, %s529 [#allocation2]
          %v531 = vld [vmem:[%s530] sm:$0x7]
          %v535 = vlaneseq
          %v536 = vshrl.u32 %v535, 7
          %v537 = vsub.s32 0, %v536
          %v538 = vrot.slane %v531, %v537
          %v539 = vlaneseq
          %v540 = vshrl.u32 %v539, 7
          %v541 = vsub.s32 1, %v540
          %v542 = vrot.slane %v531, %v541
          %v545 = vlaneseq
          %v546 = vshrl.u32 %v545, 7
          %v547 = vsub.s32 2, %v546
          %v548 = vrot.slane %v531, %v547
          %549 = vrot.lane.b32.xlu0 %v538, 127
          %v550 = vpop.permute.xlu0 %549
          %551 = vrot.lane.b32.xlu0 %v542, 127
          %v552 = vpop.permute.xlu0 %551
          %553 = vrot.lane.b32.xlu0 %v548, 127
          %v554 = vpop.permute.xlu0 %553
          %v555 = vsel %vm323, %v550, %v552
          %v556 = vsel %vm323, %v552, %v554
          %559 = vrot.lane.b32.xlu0 %v538, 126
          %v560 = vpop.permute.xlu0 %559
          %561 = vrot.lane.b32.xlu0 %v542, 126
          %v562 = vpop.permute.xlu0 %561
          %563 = vrot.lane.b32.xlu0 %v548, 126
          %v564 = vpop.permute.xlu0 %563
          %v565 = vsel %vm334, %v560, %v562
          %v566 = vsel %vm334, %v562, %v564
          %v567 = vsel %vm407, %v343, %v360
          %v568 = vsel %vm407, %v347, %v361
          %v569 = vsel %vm410, %v567, %v370
          %v570 = vsel %vm410, %v568, %v371
          %v571 = vsel %vm413, %v569, %v378
          %v572 = vsel %vm413, %v570, %v382
          %v573 = vsel %vm416, %v571, %v395
          %v574 = vsel %vm416, %v572, %v396
          %v575 = vsel %vm419, %v573, %v405
          %v576 = vsel %vm419, %v574, %v406
          %v577 = vsel %vm422, %v575, %v538
          %v578 = vsel %vm422, %v576, %v542
          %v579 = vsel %vm425, %v577, %v555
          %v580 = vsel %vm425, %v578, %v556
          %v581 = vsel %vm407, %v565, 0
          %v583 = vsel %vm407, %v566, 0
          %585 = vmatprep.subr.mxu0 %v580
          %586 = vmatpush1.msra.mxu0 %v579
          %587 = vmatprep.subr.mxu0 %v583
          %588 = vmatpush1.msra.mxu0 %v581
          %589 = vmatprep.subr.mxu0 0.0
          %590 = vmatpush1.msra.mxu0 0.0
          %591 = vmatprep.subr.mxu0 0.0
          %592 = vmatpush1.msra.mxu0 0.0
          %593 = vmatprep.subr.mxu0 0.0
          %594 = vmatpush1.msra.mxu0 0.0
          %595 = vmatprep.subr.mxu0 0.0
          %596 = vmatpush1.msra.mxu0 0.0
          %597 = vmatprep.subr.mxu0 0.0
          %598 = vmatpush1.msra.mxu0 0.0
          %599 = vmatprep.subr.mxu0 0.0
          %600 = vmatpush1.msra.mxu0 0.0
          %601 = vmatprep.subr.mxu0 0.0
          %602 = vmatpush1.msra.mxu0 0.0
          %603 = vmatprep.subr.mxu0 0.0
          %604 = vmatpush1.msra.mxu0 0.0
          %605 = vmatprep.subr.mxu0 0.0
          %606 = vmatpush1.msra.mxu0 0.0
          %607 = vmatprep.subr.mxu0 0.0
          %608 = vmatpush1.msra.mxu0 0.0
          %609 = vmatprep.subr.mxu0 0.0
          %610 = vmatpush1.msra.mxu0 0.0
          %611 = vmatprep.subr.mxu0 0.0
          %612 = vmatpush1.msra.mxu0 0.0
          %613 = vmatprep.subr.mxu0 0.0
          %614 = vmatpush1.msra.mxu0 0.0
          %615 = vmatprep.subr.mxu0 0.0
          %616 = vmatpush1.msra.mxu0 0.0
          %617 = vmatprep.subr.mxu0 0.0
          %618 = vmatpush1.msra.mxu0 0.0
          %619 = vmatprep.subr.mxu0 0.0
          %620 = vmatpush1.msra.mxu0 0.0
          %621 = vmatprep.subr.mxu0 0.0
          %622 = vmatpush1.msra.mxu0 0.0
          %623 = vmatprep.subr.mxu0 0.0
          %624 = vmatpush1.msra.mxu0 0.0
          %625 = vmatprep.subr.mxu0 0.0
          %626 = vmatpush1.msra.mxu0 0.0
          %627 = vmatprep.subr.mxu0 0.0
          %628 = vmatpush1.msra.mxu0 0.0
          %629 = vmatprep.subr.mxu0 0.0
          %630 = vmatpush1.msra.mxu0 0.0
          %631 = vmatprep.subr.mxu0 0.0
          %632 = vmatpush1.msra.mxu0 0.0
          %633 = vmatprep.subr.mxu0 0.0
          %634 = vmatpush1.msra.mxu0 0.0
          %635 = vmatprep.subr.mxu0 0.0
          %636 = vmatpush1.msra.mxu0 0.0
          %637 = vmatprep.subr.mxu0 0.0
          %638 = vmatpush1.msra.mxu0 0.0
          %639 = vmatprep.subr.mxu0 0.0
          %640 = vmatpush1.msra.mxu0 0.0
          %641 = vmatprep.subr.mxu0 0.0
          %642 = vmatpush1.msra.mxu0 0.0
          %643 = vmatprep.subr.mxu0 0.0
          %644 = vmatpush1.msra.mxu0 0.0
          %645 = vmatprep.subr.mxu0 0.0
          %646 = vmatpush1.msra.mxu0 0.0
          %647 = vmatprep.subr.mxu0 0.0
          %648 = vmatpush1.msra.mxu0 0.0
          %649 = vmatprep.mubr.f32.mxu0 0.0
          %650 = vmatmul.mubr.f32.gmra.mrb[0].mxu0 %v430
          %v651 = vpop.f32.mrb[0].mxu0
          %v652 = vadd.f32 0.0, %v651
          %v653 = vpop.f32.mrb[0].mxu0
          %v654 = vadd.f32 0.0, %v653
          %655 = vmatprep.mubr.f32.mxu0 0.0
          %656 = vmatmul.mubr.f32.gmra.mrb[0].mxu0 %v433
          %v657 = vpop.f32.mrb[0].mxu0
          %v658 = vadd.f32 0.0, %v657
          %v659 = vpop.f32.mrb[0].mxu0
          %v660 = vadd.f32 0.0, %v659
          %661 = vdwg.mxu0
          %v662 = vmul.f32 %v652, %v263
          %v663 = vmul.f32 %v654, %v263
          %v664 = vmul.f32 %v658, %v268
          %v665 = vmul.f32 %v660, %v268
          %v666 = vadd.f32 %v662, %v275
          %v667 = vadd.f32 %v663, %v275
          %v668 = vadd.f32 %v664, %v280
          %v669 = vadd.f32 %v665, %v280
          %v670 = vmax.f32 %v666, 0.0
          %v671 = vmax.f32 %v667, 0.0
          %v672 = vmax.f32 %v668, 0.0
          %v673 = vmax.f32 %v669, 0.0
          %v674 = vmax.f32 %v524, %v670
          %v675 = vmax.f32 %v525, %v671
          %v676 = vmax.f32 %v526, %v672
          %v677 = vmax.f32 %v527, %v673
          %v678 = vld [vmem:[#allocation5] sm:$0xff]
          %v679 = vld [vmem:[#allocation5 + $0x8] sm:$0xff]
          %v680 = vld [vmem:[#allocation5 + $0x10] sm:$0xff]
          %v681 = vld [vmem:[#allocation5 + $0x18] sm:$0xff]
          %v682 = vld [vmem:[#allocation5 + $0x20] sm:$0xff]
          %v683 = vld [vmem:[#allocation5 + $0x28] sm:$0xff]
          %v684 = vld [vmem:[#allocation5 + $0x30] sm:$0xff]
          %v685 = vld [vmem:[#allocation5 + $0x38] sm:$0xff]
          %v686 = vld [vmem:[#allocation5 + $0x40] sm:$0xff]
          %v687 = vld [vmem:[#allocation5 + $0x48] sm:$0xff]
          %v688 = vld [vmem:[#allocation5 + $0x50] sm:$0xff]
          %v689 = vld [vmem:[#allocation5 + $0x58] sm:$0xff]
          %v690 = vld [vmem:[#allocation5 + $0x60] sm:$0xff]
          %v691 = vld [vmem:[#allocation5 + $0x68] sm:$0xff]
          %v692 = vld [vmem:[#allocation5 + $0x70] sm:$0xff]
          %v693 = vld [vmem:[#allocation5 + $0x78] sm:$0xff]
          %v694 = vld [vmem:[#allocation5 + $0x80] sm:$0xff]
          %v695 = vld [vmem:[#allocation5 + $0x88] sm:$0xff]
          %v696 = vld [vmem:[#allocation5 + $0x90] sm:$0xff]
          %v697 = vld [vmem:[#allocation5 + $0x98] sm:$0xff]
          %v698 = vld [vmem:[#allocation5 + $0xa0] sm:$0xff]
          %v699 = vld [vmem:[#allocation5 + $0xa8] sm:$0xff]
          %v700 = vld [vmem:[#allocation5 + $0xb0] sm:$0xff]
          %v701 = vld [vmem:[#allocation5 + $0xb8] sm:$0xff]
          %v702 = vld [vmem:[#allocation5 + $0xc0] sm:$0xff]
          %v703 = vld [vmem:[#allocation5 + $0xc8] sm:$0xff]
          %v704 = vld [vmem:[#allocation5 + $0xd0] sm:$0xff]
          %v705 = vld [vmem:[#allocation5 + $0xd8] sm:$0xff]
          %v706 = vld [vmem:[#allocation5 + $0xe0] sm:$0xff]
          %v707 = vld [vmem:[#allocation5 + $0xe8] sm:$0xff]
          %v708 = vld [vmem:[#allocation5 + $0xf0] sm:$0xff]
          %v709 = vld [vmem:[#allocation5 + $0xf8] sm:$0xff]
          %v710 = vld [vmem:[#allocation5 + $0x100] sm:$0xff]
          %v711 = vld [vmem:[#allocation5 + $0x108] sm:$0xff]
          %v712 = vld [vmem:[#allocation5 + $0x110] sm:$0xff]
          %v713 = vld [vmem:[#allocation5 + $0x118] sm:$0xff]
          %v714 = vld [vmem:[#allocation5 + $0x120] sm:$0xff]
          %v715 = vld [vmem:[#allocation5 + $0x128] sm:$0xff]
          %v716 = vld [vmem:[#allocation5 + $0x130] sm:$0xff]
          %v717 = vld [vmem:[#allocation5 + $0x138] sm:$0xff]
          %v718 = vld [vmem:[#allocation5 + $0x140] sm:$0xff]
          %v719 = vld [vmem:[#allocation5 + $0x148] sm:$0xff]
          %v720 = vld [vmem:[#allocation5 + $0x150] sm:$0xff]
          %v721 = vld [vmem:[#allocation5 + $0x158] sm:$0xff]
          %v722 = vld [vmem:[#allocation5 + $0x160] sm:$0xff]
          %v723 = vld [vmem:[#allocation5 + $0x168] sm:$0xff]
          %v724 = vld [vmem:[#allocation5 + $0x170] sm:$0xff]
          %v725 = vld [vmem:[#allocation5 + $0x178] sm:$0xff]
          %v726 = vld [vmem:[#allocation5 + $0x180] sm:$0xff]
          %v727 = vld [vmem:[#allocation5 + $0x188] sm:$0xff]
          %v728 = vld [vmem:[#allocation5 + $0x190] sm:$0xff]
          %v729 = vld [vmem:[#allocation5 + $0x198] sm:$0xff]
          %v730 = vld [vmem:[#allocation5 + $0x1a0] sm:$0xff]
          %v731 = vld [vmem:[#allocation5 + $0x1a8] sm:$0xff]
          %v732 = vld [vmem:[#allocation5 + $0x1b0] sm:$0xff]
          %v733 = vld [vmem:[#allocation5 + $0x1b8] sm:$0xff]
          %v734 = vld [vmem:[#allocation5 + $0x1c0] sm:$0xff]
          %v735 = vld [vmem:[#allocation5 + $0x1c8] sm:$0xff]
          %v736 = vld [vmem:[#allocation5 + $0x1d0] sm:$0xff]
          %v737 = vld [vmem:[#allocation5 + $0x1d8] sm:$0xff]
          %v738 = vld [vmem:[#allocation5 + $0x1e0] sm:$0xff]
          %v739 = vld [vmem:[#allocation5 + $0x1e8] sm:$0xff]
          %v740 = vld [vmem:[#allocation5 + $0x1f0] sm:$0xff]
          %v741 = vld [vmem:[#allocation5 + $0x1f8] sm:$0xff]
          %742 = vmatprep.subr.mxu0 %v679
          %743 = vmatpush1.msra.mxu0 %v678
          %744 = vmatprep.subr.mxu0 %v681
          %745 = vmatpush1.msra.mxu0 %v680
          %746 = vmatprep.subr.mxu0 %v683
          %747 = vmatpush1.msra.mxu0 %v682
          %748 = vmatprep.subr.mxu0 %v685
          %749 = vmatpush1.msra.mxu0 %v684
          %750 = vmatprep.subr.mxu0 %v687
          %751 = vmatpush1.msra.mxu0 %v686
          %752 = vmatprep.subr.mxu0 %v689
          %753 = vmatpush1.msra.mxu0 %v688
          %754 = vmatprep.subr.mxu0 %v691
          %755 = vmatpush1.msra.mxu0 %v690
          %756 = vmatprep.subr.mxu0 %v693
          %757 = vmatpush1.msra.mxu0 %v692
          %758 = vmatprep.subr.mxu0 %v695
          %759 = vmatpush1.msra.mxu0 %v694
          %760 = vmatprep.subr.mxu0 %v697
          %761 = vmatpush1.msra.mxu0 %v696
          %762 = vmatprep.subr.mxu0 %v699
          %763 = vmatpush1.msra.mxu0 %v698
          %764 = vmatprep.subr.mxu0 %v701
          %765 = vmatpush1.msra.mxu0 %v700
          %766 = vmatprep.subr.mxu0 %v703
          %767 = vmatpush1.msra.mxu0 %v702
          %768 = vmatprep.subr.mxu0 %v705
          %769 = vmatpush1.msra.mxu0 %v704
          %770 = vmatprep.subr.mxu0 %v707
          %771 = vmatpush1.msra.mxu0 %v706
          %772 = vmatprep.subr.mxu0 %v709
          %773 = vmatpush1.msra.mxu0 %v708
          %774 = vmatprep.subr.mxu0 %v711
          %775 = vmatpush1.msra.mxu0 %v710
          %776 = vmatprep.subr.mxu0 %v713
          %777 = vmatpush1.msra.mxu0 %v712
          %778 = vmatprep.subr.mxu0 %v715
          %779 = vmatpush1.msra.mxu0 %v714
          %780 = vmatprep.subr.mxu0 %v717
          %781 = vmatpush1.msra.mxu0 %v716
          %782 = vmatprep.subr.mxu0 %v719
          %783 = vmatpush1.msra.mxu0 %v718
          %784 = vmatprep.subr.mxu0 %v721
          %785 = vmatpush1.msra.mxu0 %v720
          %786 = vmatprep.subr.mxu0 %v723
          %787 = vmatpush1.msra.mxu0 %v722
          %788 = vmatprep.subr.mxu0 %v725
          %789 = vmatpush1.msra.mxu0 %v724
          %790 = vmatprep.subr.mxu0 %v727
          %791 = vmatpush1.msra.mxu0 %v726
          %792 = vmatprep.subr.mxu0 %v729
          %793 = vmatpush1.msra.mxu0 %v728
          %794 = vmatprep.subr.mxu0 %v731
          %795 = vmatpush1.msra.mxu0 %v730
          %796 = vmatprep.subr.mxu0 %v733
          %797 = vmatpush1.msra.mxu0 %v732
          %798 = vmatprep.subr.mxu0 %v735
          %799 = vmatpush1.msra.mxu0 %v734
          %800 = vmatprep.subr.mxu0 %v737
          %801 = vmatpush1.msra.mxu0 %v736
          %802 = vmatprep.subr.mxu0 %v739
          %803 = vmatpush1.msra.mxu0 %v738
          %804 = vmatprep.subr.mxu0 %v741
          %805 = vmatpush1.msra.mxu0 %v740
          %806 = vmatprep.mubr.f32.mxu0 %v675
          %807 = vmatmul.mubr.f32.gmra.mrb[0].mxu0 %v674
          %v808 = vpop.f32.mrb[0].mxu0
          %v809 = vadd.f32 0.0, %v808
          %v810 = vpop.f32.mrb[0].mxu0
          %v811 = vadd.f32 0.0, %v810
          %812 = vmatprep.mubr.f32.mxu0 %v677
          %813 = vmatmul.mubr.f32.gmra.mrb[0].mxu0 %v676
          %v814 = vpop.f32.mrb[0].mxu0
          %v815 = vadd.f32 0.0, %v814
          %v816 = vpop.f32.mrb[0].mxu0
          %v817 = vadd.f32 0.0, %v816
          %818 = vdwg.mxu0
          %v819 = vmax.f32 %v809, %v811
          %v820 = vmax.f32 %v815, %v817
          %s821 = smul.u32 %s283, 16
          %s822 = scalar_lea.vmem %s257, %s821 [#allocation7]
          %823 = vst [vmem:[%s822] sm:$0xff] %v819
          %824 = vst [vmem:[%s822 + $0x8] sm:$0xff] %v820
        $region53: #{tpu_custom_call.1} parent=39 // loop_footer
          %s287 = sadd.s32 1, %s283
        $region54: #{tpu_custom_call.1} parent=39 // loop_footer_branch
          %282 = sbr.rel target = $region50
        $region55: #{tpu_custom_call.1} parent=39 // loop_exit
          _
        %s825 = sand.u32 %s141, 1
        %s826 = scalar_lea.sflag [#allocation4], %s825
        %s827 = sand.u32 %s141, 1
        %s828 = smul.addr %s827, 256
        %s829 = scalar_lea.vmem [#allocation7], %s828
        // Predicated region
        $region56: #{tpu_custom_call.1} parent=39 // pred_check
          %p830 = pneg %p151
        $region57: #{tpu_custom_call.1} parent=39 // pred_check_branch
          %832 = sbr.rel (%p830) target = $region59
        $region58: #{tpu_custom_call.1} parent=39 // pred_region
          %s834 = ssub.s32 4096, 4096
          %835 = vsyncadd %s826, %s834
          %s836 = smul.addr %s23, 32
          %s837 = smul.addr %s836, 128
          %s838 = scalar_lea.hbm %s5, %s837
          %s839 = sshll.u32 %s829, 4
          %s840 = int_to_ptr.vmem [resolvable:$true] %s839
          %845 = dma.vmem_to_hbm [thread:$0]  %s840, 4096, %s838, %s826, 128, 128, 8
        $region59: #{tpu_custom_call.1} parent=39 // pred_fallthru
          _
      $region40: #{tpu_custom_call.1} parent=5 // pred_fallthru
        _
      %p846 = scmp.le.s32.totalorder 2, %s18
      // Predicated region
      $region60: #{tpu_custom_call.1} parent=5 // pred_check
        %p847 = pneg %p846
      $region61: #{tpu_custom_call.1} parent=5 // pred_check_branch
        %849 = sbr.rel (%p847) target = $region63
      $region62: #{tpu_custom_call.1} parent=5 // pred_region
        %s850 = ssub.s32 %s18, 2
        // Predicated region
        $region64: #{tpu_custom_call.1} parent=62 // pred_check
          %p851 = pneg %p157
        $region65: #{tpu_custom_call.1} parent=62 // pred_check_branch
          %853 = sbr.rel (%p851) target = $region67
        $region66: #{tpu_custom_call.1} parent=62 // pred_region
          %s854 = sand.u32 %s142, 1
          %s855 = scalar_lea.sflag [#allocation4], %s854
          %s856 = sand.u32 %s142, 1
          %s857 = smul.addr %s856, 256
          %s858 = scalar_lea.vmem [#allocation7], %s857
          %859 = dma.done %s855, 4096
        $region67: #{tpu_custom_call.1} parent=62 // pred_fallthru
          _
      $region63: #{tpu_custom_call.1} parent=5 // pred_fallthru
        _
    $region6: #{tpu_custom_call.1} parent=1 // loop_footer
      %s22 = sadd.s32 1, %s18
    $region7: #{tpu_custom_call.1} parent=1 // loop_footer_branch
      %17 = sbr.rel target = $region3
    $region8: #{tpu_custom_call.1} parent=1 // loop_exit
      _
    %860 = vsyncpa [#allocation3], 1
    %s861 = scalar_lea.sflag [#allocation3], 1
    %862 = vsyncpa %s861, 1
    %863 = vsyncpa [#allocation6], 1
    %864 = vsyncpa [#allocation4], 1
    %s865 = scalar_lea.sflag [#allocation4], 1
    %866 = vsyncpa %s865, 1

</llo_original>
